<compile_context>
chip_gen: v6e
topology: v6e:2x2x1
jax: 0.10.0
libtpu: 0.0.40
codegen_flags: <defaults>
</compile_context>

<pallas_src>
import functools

import jax
import jax.numpy as jnp
from jax import lax
from jax.experimental import pallas as pl
from jax.experimental.pallas import tpu as pltpu

NEG_SLOPE = 0.01  # torch.nn.LeakyReLU default


def _leaky_relu(x):
    return jnp.where(x > 0, x, NEG_SLOPE * x)


def _round_up(n, m):
    return ((n + m - 1) // m) * m


def encoder_kernel(x_ref, w1_ref, b1_ref, w2_ref, b2_ref, o_ref):
    # Contract x [TB, d_in] with w1 [h0, d_in] along the `in` axis (trans_b),
    # so no wrapper-side transpose of the weights is needed.
    dn = (((1,), (1,)), ((), ()))
    h = lax.dot_general(x_ref[...], w1_ref[...], dn,
                        preferred_element_type=jnp.float32)
    h = _leaky_relu(h + b1_ref[...].astype(jnp.float32))

    y = lax.dot_general(h.astype(w2_ref.dtype), w2_ref[...], dn,
                        preferred_element_type=jnp.float32)
    y = _leaky_relu(y + b2_ref[...].astype(jnp.float32))
    o_ref[...] = y.astype(o_ref.dtype)


@functools.partial(jax.jit, static_argnames=("block_b",))
def encoder_forward(x, w1, b1, w2, b2, *, block_b=512):
    """x: [B, d_in]; w1: [h0, d_in]; b1: [h0]; w2: [d_out, h0]; b2: [d_out]."""
    B, d_in = x.shape
    h0 = w1.shape[0]
    d_out = w2.shape[0]
    dtype = x.dtype

    # Sublane multiple: 8 rows for f32, 16 for bf16 (packed sublanes).
    sub = 16 if dtype == jnp.bfloat16 else 8
    tb = min(_round_up(block_b, sub), _round_up(B, sub))
    b_pad = _round_up(B, tb)
    if b_pad != B:
        x = jnp.pad(x, ((0, b_pad - B), (0, 0)))
    grid = (b_pad // tb,)

    b1_2d = b1.reshape(1, h0)
    b2_2d = b2.reshape(1, d_out)

    itemsize = jnp.dtype(dtype).itemsize
    cost = pl.CostEstimate(
        flops=2 * b_pad * (d_in * h0 + h0 * d_out),
        transcendentals=0,
        bytes_accessed=(b_pad * d_in * itemsize            # x stream
                        + b_pad * d_out * itemsize         # out stream
                        + (w1.size + w2.size) * jnp.dtype(w1.dtype).itemsize
                        + (b1.size + b2.size) * jnp.dtype(b1.dtype).itemsize),
    )

    out = pl.pallas_call(
        encoder_kernel,
        out_shape=jax.ShapeDtypeStruct((b_pad, d_out), dtype),
        grid=grid,
        in_specs=[
            pl.BlockSpec((tb, d_in), lambda i: (i, 0)),    # x: tiled over batch
            pl.BlockSpec((h0, d_in), lambda i: (0, 0)),    # w1: resident
            pl.BlockSpec((1, h0), lambda i: (0, 0)),       # b1: resident
            pl.BlockSpec((d_out, h0), lambda i: (0, 0)),   # w2: resident
            pl.BlockSpec((1, d_out), lambda i: (0, 0)),    # b2: resident
        ],
        out_specs=pl.BlockSpec((tb, d_out), lambda i: (i, 0)),
        compiler_params=pltpu.CompilerParams(
            dimension_semantics=("parallel",)),
        cost_estimate=cost,
    )(x, w1, b1_2d, w2, b2_2d)

    return out[:B] if b_pad != B else out


def init_linear_params(key, in_features, out_features, dtype=jnp.float32):
    # Deterministic init mimicking torch.nn.Linear's uniform(-1/sqrt(in), 1/sqrt(in)).
    k_w, k_b = jax.random.split(key)
    bound = 1.0 / jnp.sqrt(in_features)
    w = jax.random.uniform(k_w, (out_features, in_features), dtype,
                           minval=-bound, maxval=bound)
    b = jax.random.uniform(k_b, (out_features,), dtype,
                           minval=-bound, maxval=bound)
    return w, b


def reference_forward(x, w1, b1, w2, b2):
    h = _leaky_relu(x @ w1.T + b1)
    return _leaky_relu(h @ w2.T + b2)


if __name__ == "__main__":
    key = jax.random.PRNGKey(0)
    k_x, k_l1, k_l2, k_x2 = jax.random.split(key, 4)

    # dims = (input, h0, output)
    dims = (32, 64, 16)
    batch = 8

    x = jax.random.normal(k_x, (batch, dims[0]), jnp.float32)
    w1, b1 = init_linear_params(k_l1, dims[0], dims[1])
    w2, b2 = init_linear_params(k_l2, dims[1], dims[2])

    # --- f32 path, single tile (batch=8) ---
    out = jax.block_until_ready(encoder_forward(x, w1, b1, w2, b2))
    ref = reference_forward(x, w1, b1, w2, b2)
    assert out.shape == (batch, dims[2])
    assert jnp.allclose(out, ref, atol=1e-5, rtol=1e-5), "f32 mismatch vs reference"

    # --- f32 path, multi-tile grid with padding (batch=1000 -> 2 tiles of 512) ---
    xb = jax.random.normal(k_x2, (1000, dims[0]), jnp.float32)
    outb = jax.block_until_ready(encoder_forward(xb, w1, b1, w2, b2))
    refb = reference_forward(xb, w1, b1, w2, b2)
    assert outb.shape == (1000, dims[2])
    assert jnp.allclose(outb, refb, atol=1e-5, rtol=1e-5), "gridded f32 mismatch"

    # --- bf16 operand path (f32 accumulation inside the kernel) ---
    out_bf = encoder_forward(x.astype(jnp.bfloat16), w1.astype(jnp.bfloat16),
                             b1.astype(jnp.bfloat16), w2.astype(jnp.bfloat16),
                             b2.astype(jnp.bfloat16))
    out_bf = jax.block_until_ready(out_bf).astype(jnp.float32)
    assert jnp.allclose(out_bf, ref, atol=5e-2, rtol=5e-2), "bf16 mismatch vs reference"

    print("KERNEL_OK")
</pallas_src>

<mosaic_0001>
module attributes {stable_mosaic.version = 11 : i64} {
  func.func @encoder_kernel(%arg0: i32, %arg1: memref<8x32xf32, #tpu.memory_space<vmem>>, %arg2: memref<64x32xf32, #tpu.memory_space<vmem>>, %arg3: memref<1x64xf32, #tpu.memory_space<vmem>>, %arg4: memref<16x64xf32, #tpu.memory_space<vmem>>, %arg5: memref<1x16xf32, #tpu.memory_space<vmem>>, %arg6: memref<8x16xf32, #tpu.memory_space<vmem>>) attributes {dimension_semantics = [#tpu.dimension_semantics<parallel>], iteration_bounds = array<i64: 1>, scalar_prefetch = 0 : i64, scratch_operands = 0 : i64, tpu.core_type = #tpu.core_type<tc>, window_params = [{transform_indices = @transform_0, window_bounds = array<i64: 8, 32>}, {pipeline_mode = #tpu.pipeline_mode<synchronous>, transform_indices = @transform_1, window_bounds = array<i64: 64, 32>}, {pipeline_mode = #tpu.pipeline_mode<synchronous>, transform_indices = @transform_2, window_bounds = array<i64: 1, 64>}, {pipeline_mode = #tpu.pipeline_mode<synchronous>, transform_indices = @transform_3, window_bounds = array<i64: 16, 64>}, {pipeline_mode = #tpu.pipeline_mode<synchronous>, transform_indices = @transform_4, window_bounds = array<i64: 1, 16>}, {transform_indices = @transform_5, window_bounds = array<i64: 8, 16>}]} {
    %c0 = arith.constant 0 : index
    %c0_0 = arith.constant 0 : index
    %0 = vector.load %arg1[%c0, %c0_0] : memref<8x32xf32, #tpu.memory_space<vmem>>, vector<8x32xf32>
    %c0_1 = arith.constant 0 : index
    %c0_2 = arith.constant 0 : index
    %1 = vector.load %arg2[%c0_1, %c0_2] : memref<64x32xf32, #tpu.memory_space<vmem>>, vector<64x32xf32>
    %cst = arith.constant dense<0.000000e+00> : vector<8x64xf32>
    %2 = tpu.matmul %0, %1, %cst {dimension_numbers = #tpu.dot_dimension_numbers<[1], [1], [0], [0], [0, 0, 1, 0], [], []>} : vector<8x32xf32>, vector<64x32xf32>, vector<8x64xf32> -> vector<8x64xf32>
    %c0_3 = arith.constant 0 : index
    %c0_4 = arith.constant 0 : index
    %3 = vector.load %arg3[%c0_3, %c0_4] : memref<1x64xf32, #tpu.memory_space<vmem>>, vector<1x64xf32>
    %4 = vector.broadcast %3 : vector<1x64xf32> to vector<8x64xf32>
    %5 = arith.addf %2, %4 : vector<8x64xf32>
    %cst_5 = arith.constant 0.000000e+00 : f32
    %6 = vector.broadcast %cst_5 : f32 to vector<8x64xf32>
    %7 = arith.cmpf ogt, %5, %6 : vector<8x64xf32>
    %cst_6 = arith.constant 0.00999999977 : f32
    %8 = vector.broadcast %cst_6 : f32 to vector<8x64xf32>
    %9 = arith.mulf %8, %5 : vector<8x64xf32>
    %10 = arith.select %7, %5, %9 : vector<8x64xi1>, vector<8x64xf32>
    %c0_7 = arith.constant 0 : index
    %c0_8 = arith.constant 0 : index
    %11 = vector.load %arg4[%c0_7, %c0_8] : memref<16x64xf32, #tpu.memory_space<vmem>>, vector<16x64xf32>
    %cst_9 = arith.constant dense<0.000000e+00> : vector<8x16xf32>
    %12 = tpu.matmul %10, %11, %cst_9 {dimension_numbers = #tpu.dot_dimension_numbers<[1], [1], [0], [0], [0, 0, 1, 0], [], []>} : vector<8x64xf32>, vector<16x64xf32>, vector<8x16xf32> -> vector<8x16xf32>
    %c0_10 = arith.constant 0 : index
    %c0_11 = arith.constant 0 : index
    %13 = vector.load %arg5[%c0_10, %c0_11] : memref<1x16xf32, #tpu.memory_space<vmem>>, vector<1x16xf32>
    %14 = vector.broadcast %13 : vector<1x16xf32> to vector<8x16xf32>
    %15 = arith.addf %12, %14 : vector<8x16xf32>
    %cst_12 = arith.constant 0.000000e+00 : f32
    %16 = vector.broadcast %cst_12 : f32 to vector<8x16xf32>
    %17 = arith.cmpf ogt, %15, %16 : vector<8x16xf32>
    %cst_13 = arith.constant 0.00999999977 : f32
    %18 = vector.broadcast %cst_13 : f32 to vector<8x16xf32>
    %19 = arith.mulf %18, %15 : vector<8x16xf32>
    %20 = arith.select %17, %15, %19 : vector<8x16xi1>, vector<8x16xf32>
    %c0_14 = arith.constant 0 : index
    %c0_15 = arith.constant 0 : index
    %21 = vector.load %arg6[%c0_14, %c0_15] : memref<8x16xf32, #tpu.memory_space<vmem>>, vector<8x16xf32>
    tpu.vector_store %arg6[%c0_14, %c0_15], %20 {strides = array<i32>} : memref<8x16xf32, #tpu.memory_space<vmem>>, vector<8x16xf32>,
    return
  }
  func.func @transform_0(%arg0: i32) -> (i32, i32) {
    %c0_i32 = arith.constant 0 : i32
    %c0_i32_0 = arith.constant 0 : i32
    return %arg0, %c0_i32 : i32, i32
  }
  func.func @transform_1(%arg0: i32) -> (i32, i32) {
    %c0_i32 = arith.constant 0 : i32
    %c0_i32_0 = arith.constant 0 : i32
    %c0_i32_1 = arith.constant 0 : i32
    return %c0_i32, %c0_i32_0 : i32, i32
  }
  func.func @transform_2(%arg0: i32) -> (i32, i32) {
    %c0_i32 = arith.constant 0 : i32
    %c0_i32_0 = arith.constant 0 : i32
    %c0_i32_1 = arith.constant 0 : i32
    return %c0_i32, %c0_i32_0 : i32, i32
  }
  func.func @transform_3(%arg0: i32) -> (i32, i32) {
    %c0_i32 = arith.constant 0 : i32
    %c0_i32_0 = arith.constant 0 : i32
    %c0_i32_1 = arith.constant 0 : i32
    return %c0_i32, %c0_i32_0 : i32, i32
  }
  func.func @transform_4(%arg0: i32) -> (i32, i32) {
    %c0_i32 = arith.constant 0 : i32
    %c0_i32_0 = arith.constant 0 : i32
    %c0_i32_1 = arith.constant 0 : i32
    return %c0_i32, %c0_i32_0 : i32, i32
  }
  func.func @transform_5(%arg0: i32) -> (i32, i32) {
    %c0_i32 = arith.constant 0 : i32
    %c0_i32_0 = arith.constant 0 : i32
    return %arg0, %c0_i32 : i32, i32
  }
}

</mosaic_0001>

<llo_original>
// kernel: encoder_forward.1
$region0: #{encoder_forward.1}
  #allocation0 [shape = 'u32[]', space=smem, size = 0x4, offset = 0x4, fixed_abs, tag = 'smem constant byte address 0x4 - core index']
  #allocation1 [shape = 'u32[144,128]{1,0:T(1,128)}', space=vmem, size = 0x12000, scoped, tag = 'internal scratch']
  %s0 = inlined_call_operand.vmem [shape: f32[8,32], index: 0, kind: input, shape index: {}]
  %s1 = inlined_call_operand.vmem [shape: f32[64,32], index: 1, kind: input, shape index: {}]
  %s2 = inlined_call_operand.vmem [shape: f32[1,64], index: 2, kind: input, shape index: {}]
  %s3 = inlined_call_operand.vmem [shape: f32[16,64], index: 3, kind: input, shape index: {}]
  %s4 = inlined_call_operand.vmem [shape: f32[1,16], index: 4, kind: input, shape index: {}]
  %s5 = inlined_call_operand.hbm [shape: f32[8,16], index: 5, kind: output, shape index: {}]
  %s6 = sld [smem:[#allocation0]]
  $region30: #{encoder_forward.1} parent=0
    _
  %s8 = ssub.s32 1, %s6
  %s9 = scalar_select 0, %s8, %s6
  $region1: #{encoder_forward.1} parent=0
    #allocation2 [shape = 'u8[4096]{0}', space=vmem, size = 0x1000, scoped, tag = 'output window, operand 0, single buffered']
    #allocation3 [shape = 's32[1]{0}', space=sflag, size = 0x4, scoped, tag = 'scoped memory for encoder_forward.1']
    %10 = vsyncpa [#allocation3], 0
    // Predicated region
    $region2: #{encoder_forward.1} parent=1 // pred_check
      _
    $region3: #{encoder_forward.1} parent=1 // pred_check_branch
      %12 = sbr.rel (0) target = $region5
    $region4: #{encoder_forward.1} parent=1 // pred_region
      _
    $region5: #{encoder_forward.1} parent=1 // pred_fallthru
      _
    // Predicated region
    $region6: #{encoder_forward.1} parent=1 // pred_check
      _
    $region7: #{encoder_forward.1} parent=1 // pred_check_branch
      %14 = sbr.rel (0) target = $region9
    $region8: #{encoder_forward.1} parent=1 // pred_region
      _
    $region9: #{encoder_forward.1} parent=1 // pred_fallthru
      _
    // Predicated region
    $region10: #{encoder_forward.1} parent=1 // pred_check
      _
    $region11: #{encoder_forward.1} parent=1 // pred_check_branch
      %16 = sbr.rel (0) target = $region13
    $region12: #{encoder_forward.1} parent=1 // pred_region
      _
    $region13: #{encoder_forward.1} parent=1 // pred_fallthru
      _
    // Predicated region
    $region14: #{encoder_forward.1} parent=1 // pred_check
      _
    $region15: #{encoder_forward.1} parent=1 // pred_check_branch
      %18 = sbr.rel (0) target = $region17
    $region16: #{encoder_forward.1} parent=1 // pred_region
      _
    $region17: #{encoder_forward.1} parent=1 // pred_fallthru
      _
    // Predicated region
    $region18: #{encoder_forward.1} parent=1 // pred_check
      _
    $region19: #{encoder_forward.1} parent=1 // pred_check_branch
      %20 = sbr.rel (0) target = $region21
    $region20: #{encoder_forward.1} parent=1 // pred_region
      _
    $region21: #{encoder_forward.1} parent=1 // pred_fallthru
      _
    %v21 = vld [vmem:[%s0] sm:$0xff]
    %v22 = vld [vmem:[%s1] sm:$0xff]
    %v23 = vld [vmem:[%s1 + $0x8] sm:$0xff]
    %v24 = vld [vmem:[%s1 + $0x10] sm:$0xff]
    %v25 = vld [vmem:[%s1 + $0x18] sm:$0xff]
    %v26 = vld [vmem:[%s1 + $0x20] sm:$0xff]
    %v27 = vld [vmem:[%s1 + $0x28] sm:$0xff]
    %v28 = vld [vmem:[%s1 + $0x30] sm:$0xff]
    %v29 = vld [vmem:[%s1 + $0x38] sm:$0xff]
    %v30 = vld [vmem:[%s2] sm:$0x1]
    %v32 = vlaneseq
    %v33 = vshrl.u32 %v32, 7
    %v34 = vsub.s32 0, %v33
    %v35 = vrot.slane %v30, %v34
    %vm37 = vcmask 261120
    %v39 = vsel %vm37, %v21, 0
    %v42 = vsel %vm37, %v22, 0
    %v45 = vsel %vm37, %v23, 0
    %v48 = vsel %vm37, %v24, 0
    %v51 = vsel %vm37, %v25, 0
    %v54 = vsel %vm37, %v26, 0
    %v57 = vsel %vm37, %v27, 0
    %v60 = vsel %vm37, %v28, 0
    %v63 = vsel %vm37, %v29, 0
    %65 = vmatprep.subr.mxu0 0.0
    %66 = vmatpush1.xpose.msra.mxu0 0.0
    %67 = vmatprep.subr.mxu0 0.0
    %68 = vmatpush1.xpose.msra.mxu0 0.0
    %69 = vmatprep.subr.mxu0 0.0
    %70 = vmatpush1.xpose.msra.mxu0 0.0
    %71 = vmatprep.subr.mxu0 0.0
    %72 = vmatpush1.xpose.msra.mxu0 0.0
    %73 = vmatprep.subr.mxu0 0.0
    %74 = vmatpush1.xpose.msra.mxu0 0.0
    %75 = vmatprep.subr.mxu0 0.0
    %76 = vmatpush1.xpose.msra.mxu0 0.0
    %77 = vmatprep.subr.mxu0 0.0
    %78 = vmatpush1.xpose.msra.mxu0 0.0
    %79 = vmatprep.subr.mxu0 0.0
    %80 = vmatpush1.xpose.msra.mxu0 0.0
    %81 = vmatprep.subr.mxu0 0.0
    %82 = vmatpush1.xpose.msra.mxu0 %v63
    %83 = vmatprep.subr.mxu0 0.0
    %84 = vmatpush1.xpose.msra.mxu0 %v60
    %85 = vmatprep.subr.mxu0 0.0
    %86 = vmatpush1.xpose.msra.mxu0 %v57
    %87 = vmatprep.subr.mxu0 0.0
    %88 = vmatpush1.xpose.msra.mxu0 %v54
    %89 = vmatprep.subr.mxu0 0.0
    %90 = vmatpush1.xpose.msra.mxu0 %v51
    %91 = vmatprep.subr.mxu0 0.0
    %92 = vmatpush1.xpose.msra.mxu0 %v48
    %93 = vmatprep.subr.mxu0 0.0
    %94 = vmatpush1.xpose.msra.mxu0 %v45
    %95 = vmatprep.subr.mxu0 0.0
    %96 = vmatpush1.xpose.msra.mxu0 %v42
    %97 = vmatprep.subr.mxu0 0.0
    %98 = vmatpush2.xpose.msra.mxu0 0.0
    %99 = vmatprep.subr.mxu0 0.0
    %100 = vmatpush2.xpose.msra.mxu0 0.0
    %101 = vmatprep.subr.mxu0 0.0
    %102 = vmatpush2.xpose.msra.mxu0 0.0
    %103 = vmatprep.subr.mxu0 0.0
    %104 = vmatpush2.xpose.msra.mxu0 0.0
    %105 = vmatprep.subr.mxu0 0.0
    %106 = vmatpush2.xpose.msra.mxu0 0.0
    %107 = vmatprep.subr.mxu0 0.0
    %108 = vmatpush2.xpose.msra.mxu0 0.0
    %109 = vmatprep.subr.mxu0 0.0
    %110 = vmatpush2.xpose.msra.mxu0 0.0
    %111 = vmatprep.subr.mxu0 0.0
    %112 = vmatpush2.xpose.msra.mxu0 0.0
    %113 = vmatprep.subr.mxu0 0.0
    %114 = vmatpush2.xpose.msra.mxu0 0.0
    %115 = vmatprep.subr.mxu0 0.0
    %116 = vmatpush2.xpose.msra.mxu0 0.0
    %117 = vmatprep.subr.mxu0 0.0
    %118 = vmatpush2.xpose.msra.mxu0 0.0
    %119 = vmatprep.subr.mxu0 0.0
    %120 = vmatpush2.xpose.msra.mxu0 0.0
    %121 = vmatprep.subr.mxu0 0.0
    %122 = vmatpush2.xpose.msra.mxu0 0.0
    %123 = vmatprep.subr.mxu0 0.0
    %124 = vmatpush2.xpose.msra.mxu0 0.0
    %125 = vmatprep.subr.mxu0 0.0
    %126 = vmatpush2.xpose.msra.mxu0 0.0
    %127 = vmatprep.subr.mxu0 0.0
    %128 = vmatpush2.xpose.msra.mxu0 0.0
    %129 = vmatprep.mubr.f32.mxu0 0.0
    %130 = vmatmul.mubr.f32.gmra.mxu0 %v39
    %v131 = vpop.f32.mrf.mxu0
    %v132 = vadd.f32 %v35, %v131
    %v133 = vpop.f32.mrf.mxu0
    %134 = vdwg.mxu0
    %vm135 = vcmp.gt.f32.partialorder %v132, 0.0
    %v136 = vmul.f32 %v132, 0.01
    %v137 = vsel %vm135, %v132, %v136
    %v138 = vld [vmem:[%s3] sm:$0xff]
    %v139 = vld [vmem:[%s3 + $0x8] sm:$0xff]
    %v140 = vld [vmem:[%s4] sm:$0x1]
    %v142 = vlaneseq
    %v143 = vshrl.u32 %v142, 7
    %v144 = vsub.s32 0, %v143
    %v145 = vrot.slane %v140, %v144
    %vm147 = vcmask 523264
    %v149 = vsel %vm147, %v137, 0
    %v152 = vsel %vm147, %v138, 0
    %v155 = vsel %vm147, %v139, 0
    %157 = vmatprep.subr.mxu0 0.0
    %158 = vmatpush1.xpose.msra.mxu0 0.0
    %159 = vmatprep.subr.mxu0 0.0
    %160 = vmatpush1.xpose.msra.mxu0 0.0
    %161 = vmatprep.subr.mxu0 0.0
    %162 = vmatpush1.xpose.msra.mxu0 0.0
    %163 = vmatprep.subr.mxu0 0.0
    %164 = vmatpush1.xpose.msra.mxu0 0.0
    %165 = vmatprep.subr.mxu0 0.0
    %166 = vmatpush1.xpose.msra.mxu0 0.0
    %167 = vmatprep.subr.mxu0 0.0
    %168 = vmatpush1.xpose.msra.mxu0 0.0
    %169 = vmatprep.subr.mxu0 0.0
    %170 = vmatpush1.xpose.msra.mxu0 0.0
    %171 = vmatprep.subr.mxu0 0.0
    %172 = vmatpush1.xpose.msra.mxu0 0.0
    %173 = vmatprep.subr.mxu0 0.0
    %174 = vmatpush1.xpose.msra.mxu0 0.0
    %175 = vmatprep.subr.mxu0 0.0
    %176 = vmatpush1.xpose.msra.mxu0 0.0
    %177 = vmatprep.subr.mxu0 0.0
    %178 = vmatpush1.xpose.msra.mxu0 0.0
    %179 = vmatprep.subr.mxu0 0.0
    %180 = vmatpush1.xpose.msra.mxu0 0.0
    %181 = vmatprep.subr.mxu0 0.0
    %182 = vmatpush1.xpose.msra.mxu0 0.0
    %183 = vmatprep.subr.mxu0 0.0
    %184 = vmatpush1.xpose.msra.mxu0 0.0
    %185 = vmatprep.subr.mxu0 0.0
    %186 = vmatpush1.xpose.msra.mxu0 %v155
    %187 = vmatprep.subr.mxu0 0.0
    %188 = vmatpush1.xpose.msra.mxu0 %v152
    %189 = vmatprep.subr.mxu0 0.0
    %190 = vmatpush2.xpose.msra.mxu0 0.0
    %191 = vmatprep.subr.mxu0 0.0
    %192 = vmatpush2.xpose.msra.mxu0 0.0
    %193 = vmatprep.subr.mxu0 0.0
    %194 = vmatpush2.xpose.msra.mxu0 0.0
    %195 = vmatprep.subr.mxu0 0.0
    %196 = vmatpush2.xpose.msra.mxu0 0.0
    %197 = vmatprep.subr.mxu0 0.0
    %198 = vmatpush2.xpose.msra.mxu0 0.0
    %199 = vmatprep.subr.mxu0 0.0
    %200 = vmatpush2.xpose.msra.mxu0 0.0
    %201 = vmatprep.subr.mxu0 0.0
    %202 = vmatpush2.xpose.msra.mxu0 0.0
    %203 = vmatprep.subr.mxu0 0.0
    %204 = vmatpush2.xpose.msra.mxu0 0.0
    %205 = vmatprep.subr.mxu0 0.0
    %206 = vmatpush2.xpose.msra.mxu0 0.0
    %207 = vmatprep.subr.mxu0 0.0
    %208 = vmatpush2.xpose.msra.mxu0 0.0
    %209 = vmatprep.subr.mxu0 0.0
    %210 = vmatpush2.xpose.msra.mxu0 0.0
    %211 = vmatprep.subr.mxu0 0.0
    %212 = vmatpush2.xpose.msra.mxu0 0.0
    %213 = vmatprep.subr.mxu0 0.0
    %214 = vmatpush2.xpose.msra.mxu0 0.0
    %215 = vmatprep.subr.mxu0 0.0
    %216 = vmatpush2.xpose.msra.mxu0 0.0
    %217 = vmatprep.subr.mxu0 0.0
    %218 = vmatpush2.xpose.msra.mxu0 0.0
    %219 = vmatprep.subr.mxu0 0.0
    %220 = vmatpush2.xpose.msra.mxu0 0.0
    %221 = vmatprep.mubr.f32.mxu0 0.0
    %222 = vmatmul.mubr.f32.gmra.mxu0 %v149
    %v223 = vpop.f32.mrf.mxu0
    %v224 = vadd.f32 %v145, %v223
    %v225 = vpop.f32.mrf.mxu0
    %226 = vdwg.mxu0
    %vm227 = vcmp.gt.f32.partialorder %v224, 0.0
    %v228 = vmul.f32 %v224, 0.01
    %v229 = vsel %vm227, %v224, %v228
    %vm230 = vcmask 130048
    %231 = vst.msk [vmem:[#allocation2] sm:$0xff] %vm230, %v229
    // Predicated region
    $region22: #{encoder_forward.1} parent=1 // pred_check
      _
    $region23: #{encoder_forward.1} parent=1 // pred_check_branch
      %233 = sbr.rel (0) target = $region25
    $region24: #{encoder_forward.1} parent=1 // pred_region
      %s235 = ssub.s32 128, 128
      %236 = vsyncadd [#allocation3], %s235
      %s238 = sshll.u32 [#allocation2], 4
      %s239 = int_to_ptr.vmem [resolvable:$true] %s238
      %241 = dma.vmem_to_hbm [thread:$0]  %s239, 128, %s5, [#allocation3]
    $region25: #{encoder_forward.1} parent=1 // pred_fallthru
      _
    // Predicated region
    $region26: #{encoder_forward.1} parent=1 // pred_check
      _
    $region27: #{encoder_forward.1} parent=1 // pred_check_branch
      %243 = sbr.rel (0) target = $region29
    $region28: #{encoder_forward.1} parent=1 // pred_region
      %244 = dma.done [#allocation3], 128
    $region29: #{encoder_forward.1} parent=1 // pred_fallthru
      _
    %245 = vsyncpa [#allocation3], 1

</llo_original>
